<compile_context>
chip_gen: v7x
topology: tpu7x:2x2x1
jax: 0.10.0
libtpu: 0.0.40
codegen_flags: <defaults>
</compile_context>

<pallas_src>
import math

import jax
import jax.numpy as jnp
from jax.experimental import pallas as pl
from jax.experimental.pallas import tpu as pltpu


def _round_up(a: int, b: int) -> int:
    return ((a + b - 1) // b) * b


# ---------------------------------------------------------------------------
# Fast path kernel: K (hid_dim) and N (out_dim) small enough that the whole
# weight/bias stay resident and full K / N extents fit in one block.
# Grid = (row tiles,); bias fused into the store; no scratch accumulator.
# ---------------------------------------------------------------------------
def _linear_stream_kernel(x_ref, w_ref, b_ref, o_ref):
    # x_ref: (TM, K)  w_ref: (K, N)  b_ref: (1, N)  o_ref: (TM, N)
    acc = jnp.dot(x_ref[...], w_ref[...], preferred_element_type=jnp.float32)
    o_ref[...] = (acc + b_ref[...].astype(jnp.float32)).astype(o_ref.dtype)


# ---------------------------------------------------------------------------
# General path kernel: tiled MXU matmul, grid = (M tiles, N tiles, K tiles)
# with K (reduction) last.  f32 accumulator initialised with the bias.
# ---------------------------------------------------------------------------
def _linear_tiled_kernel(x_ref, w_ref, b_ref, o_ref, acc_ref):
    k = pl.program_id(2)

    @pl.when(k == 0)
    def _():
        acc_ref[...] = jnp.broadcast_to(
            b_ref[...].astype(jnp.float32), acc_ref.shape
        )

    acc_ref[...] += jnp.dot(
        x_ref[...], w_ref[...], preferred_element_type=jnp.float32
    )

    @pl.when(k == pl.num_programs(2) - 1)
    def _():
        o_ref[...] = acc_ref[...].astype(o_ref.dtype)


def _pick_tm(M, K, N, budget_bytes=12 * 1024 * 1024):
    """Largest row-tile (multiple of 8, <=4096) whose double-buffered x/out
    tiles plus the resident weight/bias fit in a conservative VMEM budget."""
    per_row = (K + N) * 4 * 2          # x tile + out tile, f32, double-buffered
    fixed = (K * N + N) * 4 * 2        # resident weight + bias (double-buffered)
    tm = (budget_bytes - fixed) // max(per_row, 1)
    tm = max(8, (tm // 8) * 8)
    tm = min(tm, 4096)
    return min(_round_up(M, 8), tm)


def logreg_forward(x, weight, bias, *, tm_cap=512, tk_cap=512, tn_cap=512):
    """y = x @ weight.T + bias  (same as torch.nn.Linear forward).

    x:      (..., hid_dim)
    weight: (out_dim, hid_dim)   -- PyTorch nn.Linear layout
    bias:   (out_dim,)
    """
    orig_shape = x.shape
    K = orig_shape[-1]
    M = int(math.prod(orig_shape[:-1])) if len(orig_shape) > 1 else 1
    N = weight.shape[0]
    assert weight.shape[1] == K and bias.shape == (N,)

    x2 = x if x.shape == (M, K) else x.reshape(M, K)
    w_t = weight.T                     # (K, N)
    b2 = bias.reshape(1, N)
    out_dtype = x.dtype

    itemsize = jnp.dtype(out_dtype).itemsize
    cost = pl.CostEstimate(
        flops=2 * M * K * N,
        transcendentals=0,
        bytes_accessed=(M * K + K * N + N + M * N) * itemsize,
    )

    if K <= 512 and N <= 256:
        # ------------------ streaming fast path (LogReg shapes) ------------
        TM = _pick_tm(M, K, N)
        Mp = _round_up(M, TM)
        x_p = x2 if Mp == M else jnp.pad(x2, ((0, Mp - M), (0, 0)))

        out_p = pl.pallas_call(
            _linear_stream_kernel,
            out_shape=jax.ShapeDtypeStruct((Mp, N), out_dtype),
            grid_spec=pltpu.PrefetchScalarGridSpec(
                num_scalar_prefetch=0,
                grid=(Mp // TM,),
                in_specs=[
                    pl.BlockSpec((TM, K), lambda i: (i, 0)),   # full-dim K
                    pl.BlockSpec((K, N), lambda i: (0, 0)),    # resident W^T
                    pl.BlockSpec((1, N), lambda i: (0, 0)),    # resident bias
                ],
                out_specs=pl.BlockSpec((TM, N), lambda i: (i, 0)),
            ),
            compiler_params=pltpu.CompilerParams(
                dimension_semantics=("parallel",),
            ),
            cost_estimate=cost,
        )(x_p, w_t, b2)

        out = out_p if Mp == M else out_p[:M]
    else:
        # ------------------ general tiled path (large K and/or N) ----------
        TM = min(_round_up(M, 8), tm_cap)
        TK = K if K <= tk_cap else tk_cap       # full-dim block legal if TK == K
        TN = N if N <= tn_cap else tn_cap
        Mp, Kp, Np = _round_up(M, TM), _round_up(K, TK), _round_up(N, TN)

        x_p = x2 if (Mp, Kp) == (M, K) else jnp.pad(x2, ((0, Mp - M), (0, Kp - K)))
        w_p = w_t if (Kp, Np) == (K, N) else jnp.pad(w_t, ((0, Kp - K), (0, Np - N)))
        b_p = b2 if Np == N else jnp.pad(b2, ((0, 0), (0, Np - N)))

        grid = (Mp // TM, Np // TN, Kp // TK)

        out_p = pl.pallas_call(
            _linear_tiled_kernel,
            out_shape=jax.ShapeDtypeStruct((Mp, Np), out_dtype),
            grid_spec=pltpu.PrefetchScalarGridSpec(
                num_scalar_prefetch=0,
                grid=grid,
                in_specs=[
                    pl.BlockSpec((TM, TK), lambda i, j, k: (i, k)),
                    pl.BlockSpec((TK, TN), lambda i, j, k: (k, j)),
                    pl.BlockSpec((1, TN), lambda i, j, k: (0, j)),
                ],
                out_specs=pl.BlockSpec((TM, TN), lambda i, j, k: (i, j)),
                scratch_shapes=[pltpu.VMEM((TM, TN), jnp.float32)],
            ),
            compiler_params=pltpu.CompilerParams(
                dimension_semantics=("parallel", "parallel", "arbitrary"),
            ),
            cost_estimate=cost,
        )(x_p, w_p, b_p)

        out = out_p if (Mp, Np) == (M, N) else out_p[:M, :N]

    return out.reshape(orig_shape[:-1] + (N,))


if __name__ == "__main__":
    key = jax.random.PRNGKey(0)
    k1, k2, k3, k4, k5, k6, k7 = jax.random.split(key, 7)

    hid_dim, out_dim = 32, 4

    # nn.Linear parameters (PyTorch layout).
    weight = jax.random.normal(k2, (out_dim, hid_dim), dtype=jnp.float32) * 0.1
    bias = jax.random.normal(k3, (out_dim,), dtype=jnp.float32) * 0.1

    # 2D input: (batch=8, hidden=32) -> streaming fast path, no padding at all.
    x = jax.random.normal(k1, (8, hid_dim), dtype=jnp.float32)
    out = jax.block_until_ready(logreg_forward(x, weight, bias))
    ref = x @ weight.T + bias
    assert out.shape == (8, out_dim), out.shape
    assert jnp.allclose(out, ref, atol=1e-5, rtol=1e-5)

    # 3D input (batched graphs): (2, 8, 32) — exercises the flatten/reshape path.
    x3 = jax.random.normal(k4, (2, 8, hid_dim), dtype=jnp.float32)
    out3 = jax.block_until_ready(logreg_forward(x3, weight, bias))
    ref3 = jnp.einsum("bnk,ok->bno", x3, weight) + bias
    assert out3.shape == (2, 8, out_dim), out3.shape
    assert jnp.allclose(out3, ref3, atol=1e-5, rtol=1e-5)

    # Larger hid/out dims — exercises the general tiled path (K-axis reduction,
    # bias folded into the accumulator init).
    K_big, N_big, M_big = 640, 384, 24
    w_big = jax.random.normal(k5, (N_big, K_big), dtype=jnp.float32) * 0.05
    b_big = jax.random.normal(k6, (N_big,), dtype=jnp.float32) * 0.05
    x_big = jax.random.normal(k7, (M_big, K_big), dtype=jnp.float32)
    out_big = jax.block_until_ready(logreg_forward(x_big, w_big, b_big))
    ref_big = x_big @ w_big.T + b_big
    assert out_big.shape == (M_big, N_big), out_big.shape
    assert jnp.allclose(out_big, ref_big, atol=1e-4, rtol=1e-4)

    print("KERNEL_OK")
</pallas_src>

<mosaic_0001>
module attributes {stable_mosaic.version = 11 : i64} {
  func.func @_linear_stream_kernel(%arg0: i32, %arg1: memref<8x32xf32, #tpu.memory_space<vmem>>, %arg2: memref<32x4xf32, #tpu.memory_space<vmem>>, %arg3: memref<1x4xf32, #tpu.memory_space<vmem>>, %arg4: memref<8x4xf32, #tpu.memory_space<vmem>>) attributes {dimension_semantics = [#tpu.dimension_semantics<parallel>], iteration_bounds = array<i64: 1>, scalar_prefetch = 0 : i64, scratch_operands = 0 : i64, tpu.core_type = #tpu.core_type<tc>, window_params = [{transform_indices = @transform_0, window_bounds = array<i64: 8, 32>}, {pipeline_mode = #tpu.pipeline_mode<synchronous>, transform_indices = @transform_1, window_bounds = array<i64: 32, 4>}, {pipeline_mode = #tpu.pipeline_mode<synchronous>, transform_indices = @transform_2, window_bounds = array<i64: 1, 4>}, {transform_indices = @transform_3, window_bounds = array<i64: 8, 4>}]} {
    %c0 = arith.constant 0 : index
    %c0_0 = arith.constant 0 : index
    %0 = vector.load %arg1[%c0, %c0_0] : memref<8x32xf32, #tpu.memory_space<vmem>>, vector<8x32xf32>
    %c0_1 = arith.constant 0 : index
    %c0_2 = arith.constant 0 : index
    %1 = vector.load %arg2[%c0_1, %c0_2] : memref<32x4xf32, #tpu.memory_space<vmem>>, vector<32x4xf32>
    %cst = arith.constant dense<0.000000e+00> : vector<8x4xf32>
    %2 = tpu.matmul %0, %1, %cst {dimension_numbers = #tpu.dot_dimension_numbers<[1], [0], [0], [1], [0, 0, 1, 1], [], []>} : vector<8x32xf32>, vector<32x4xf32>, vector<8x4xf32> -> vector<8x4xf32>
    %c0_3 = arith.constant 0 : index
    %c0_4 = arith.constant 0 : index
    %3 = vector.load %arg3[%c0_3, %c0_4] : memref<1x4xf32, #tpu.memory_space<vmem>>, vector<1x4xf32>
    %4 = vector.broadcast %3 : vector<1x4xf32> to vector<8x4xf32>
    %5 = arith.addf %2, %4 : vector<8x4xf32>
    %c0_5 = arith.constant 0 : index
    %c0_6 = arith.constant 0 : index
    %6 = vector.load %arg4[%c0_5, %c0_6] : memref<8x4xf32, #tpu.memory_space<vmem>>, vector<8x4xf32>
    tpu.vector_store %arg4[%c0_5, %c0_6], %5 {strides = array<i32>} : memref<8x4xf32, #tpu.memory_space<vmem>>, vector<8x4xf32>,
    return
  }
  func.func @transform_0(%arg0: i32) -> (i32, i32) {
    %c0_i32 = arith.constant 0 : i32
    %c0_i32_0 = arith.constant 0 : i32
    return %arg0, %c0_i32 : i32, i32
  }
  func.func @transform_1(%arg0: i32) -> (i32, i32) {
    %c0_i32 = arith.constant 0 : i32
    %c0_i32_0 = arith.constant 0 : i32
    %c0_i32_1 = arith.constant 0 : i32
    return %c0_i32, %c0_i32_0 : i32, i32
  }
  func.func @transform_2(%arg0: i32) -> (i32, i32) {
    %c0_i32 = arith.constant 0 : i32
    %c0_i32_0 = arith.constant 0 : i32
    %c0_i32_1 = arith.constant 0 : i32
    return %c0_i32, %c0_i32_0 : i32, i32
  }
  func.func @transform_3(%arg0: i32) -> (i32, i32) {
    %c0_i32 = arith.constant 0 : i32
    %c0_i32_0 = arith.constant 0 : i32
    return %arg0, %c0_i32 : i32, i32
  }
}

</mosaic_0001>

<llo_original>
// kernel: tpu_custom_call.1
$region0: #{tpu_custom_call.1}
  #allocation0 [shape = 'u32[]', space=smem, size = 0x4, offset = 0x4, fixed_abs, tag = 'smem constant byte address 0x4 - core index']
  #allocation1 [shape = 'u32[144,128]{1,0:T(1,128)}', space=vmem, size = 0x12000, scoped, tag = 'internal scratch']
  %s0 = inlined_call_operand.vmem [shape: f32[8,32], index: 0, kind: input, shape index: {}]
  %s1 = inlined_call_operand.vmem [shape: f32[32,4], index: 1, kind: input, shape index: {}]
  %s2 = inlined_call_operand.vmem [shape: f32[1,4], index: 2, kind: input, shape index: {}]
  %s3 = inlined_call_operand.vmem [shape: f32[8,4], index: 3, kind: output, shape index: {}]
  %s4 = sld [smem:[#allocation0]]
  $region22: #{tpu_custom_call.1} parent=0
    _
  %s6 = ssub.s32 1, %s4
  %s7 = scalar_select 0, %s6, %s4
  // Predicated region
  $region2: #{tpu_custom_call.1} parent=0 // pred_check
    _
  $region3: #{tpu_custom_call.1} parent=0 // pred_check_branch
    %9 = sbr.rel (0) target = $region5
  $region4: #{tpu_custom_call.1} parent=0 // pred_region
    _
  $region5: #{tpu_custom_call.1} parent=0 // pred_fallthru
    _
  // Predicated region
  $region6: #{tpu_custom_call.1} parent=0 // pred_check
    _
  $region7: #{tpu_custom_call.1} parent=0 // pred_check_branch
    %11 = sbr.rel (0) target = $region9
  $region8: #{tpu_custom_call.1} parent=0 // pred_region
    _
  $region9: #{tpu_custom_call.1} parent=0 // pred_fallthru
    _
  // Predicated region
  $region10: #{tpu_custom_call.1} parent=0 // pred_check
    _
  $region11: #{tpu_custom_call.1} parent=0 // pred_check_branch
    %13 = sbr.rel (0) target = $region13
  $region12: #{tpu_custom_call.1} parent=0 // pred_region
    _
  $region13: #{tpu_custom_call.1} parent=0 // pred_fallthru
    _
  %v14 = vld [vmem:[%s0] sm:$0xff]
  %v15 = vld [vmem:[%s1] sm:$0xff]
  %v16 = vld [vmem:[%s1 + $0x8] sm:$0xff]
  %v17 = vld [vmem:[%s1 + $0x10] sm:$0xff]
  %v18 = vld [vmem:[%s1 + $0x18] sm:$0xff]
  %v19 = vld [vmem:[%s2] sm:$0x1]
  %v21 = vlaneseq
  %v22 = vshrl.u32 %v21, 7
  %v23 = vsub.s32 0, %v22
  %v24 = vrot.slane %v19, %v23
  %vm26 = vcmask 261120
  %v28 = vsel %vm26, %v14, 0
  %30 = vmatprep.subr.mxu0 0.0
  %31 = vmatpush1.msra.mxu0 %v15
  %32 = vmatprep.subr.mxu0 0.0
  %33 = vmatpush1.msra.mxu0 %v16
  %34 = vmatprep.subr.mxu0 0.0
  %35 = vmatpush1.msra.mxu0 %v17
  %36 = vmatprep.subr.mxu0 0.0
  %37 = vmatpush1.msra.mxu0 %v18
  %38 = vmatprep.subr.mxu0 0.0
  %39 = vmatpush1.msra.mxu0 0.0
  %40 = vmatprep.subr.mxu0 0.0
  %41 = vmatpush1.msra.mxu0 0.0
  %42 = vmatprep.subr.mxu0 0.0
  %43 = vmatpush1.msra.mxu0 0.0
  %44 = vmatprep.subr.mxu0 0.0
  %45 = vmatpush1.msra.mxu0 0.0
  %46 = vmatprep.subr.mxu0 0.0
  %47 = vmatpush1.msra.mxu0 0.0
  %48 = vmatprep.subr.mxu0 0.0
  %49 = vmatpush1.msra.mxu0 0.0
  %50 = vmatprep.subr.mxu0 0.0
  %51 = vmatpush1.msra.mxu0 0.0
  %52 = vmatprep.subr.mxu0 0.0
  %53 = vmatpush1.msra.mxu0 0.0
  %54 = vmatprep.subr.mxu0 0.0
  %55 = vmatpush1.msra.mxu0 0.0
  %56 = vmatprep.subr.mxu0 0.0
  %57 = vmatpush1.msra.mxu0 0.0
  %58 = vmatprep.subr.mxu0 0.0
  %59 = vmatpush1.msra.mxu0 0.0
  %60 = vmatprep.subr.mxu0 0.0
  %61 = vmatpush1.msra.mxu0 0.0
  %62 = vmatprep.subr.mxu0 0.0
  %63 = vmatpush1.msra.mxu0 0.0
  %64 = vmatprep.subr.mxu0 0.0
  %65 = vmatpush1.msra.mxu0 0.0
  %66 = vmatprep.subr.mxu0 0.0
  %67 = vmatpush1.msra.mxu0 0.0
  %68 = vmatprep.subr.mxu0 0.0
  %69 = vmatpush1.msra.mxu0 0.0
  %70 = vmatprep.subr.mxu0 0.0
  %71 = vmatpush1.msra.mxu0 0.0
  %72 = vmatprep.subr.mxu0 0.0
  %73 = vmatpush1.msra.mxu0 0.0
  %74 = vmatprep.subr.mxu0 0.0
  %75 = vmatpush1.msra.mxu0 0.0
  %76 = vmatprep.subr.mxu0 0.0
  %77 = vmatpush1.msra.mxu0 0.0
  %78 = vmatprep.subr.mxu0 0.0
  %79 = vmatpush1.msra.mxu0 0.0
  %80 = vmatprep.subr.mxu0 0.0
  %81 = vmatpush1.msra.mxu0 0.0
  %82 = vmatprep.subr.mxu0 0.0
  %83 = vmatpush1.msra.mxu0 0.0
  %84 = vmatprep.subr.mxu0 0.0
  %85 = vmatpush1.msra.mxu0 0.0
  %86 = vmatprep.subr.mxu0 0.0
  %87 = vmatpush1.msra.mxu0 0.0
  %88 = vmatprep.subr.mxu0 0.0
  %89 = vmatpush1.msra.mxu0 0.0
  %90 = vmatprep.subr.mxu0 0.0
  %91 = vmatpush1.msra.mxu0 0.0
  %92 = vmatprep.subr.mxu0 0.0
  %93 = vmatpush1.msra.mxu0 0.0
  %94 = vmatprep.mubr.f32.mxu0 0.0
  %95 = vmatmul.mubr.f32.gmra.mrb[0].mxu0 %v28
  %v96 = vpop.f32.mrb[0].mxu0
  %v97 = vadd.f32 %v24, %v96
  %v98 = vpop.f32.mrb[0].mxu0
  %99 = vdwg.mxu0
  %vm100 = vcmask 31744
  %101 = vst.msk [vmem:[%s3] sm:$0xff] %vm100, %v97
  // Predicated region
  $region14: #{tpu_custom_call.1} parent=0 // pred_check
    _
  $region15: #{tpu_custom_call.1} parent=0 // pred_check_branch
    %103 = sbr.rel (0) target = $region17
  $region16: #{tpu_custom_call.1} parent=0 // pred_region
    _
  $region17: #{tpu_custom_call.1} parent=0 // pred_fallthru
    _
  // Predicated region
  $region18: #{tpu_custom_call.1} parent=0 // pred_check
    _
  $region19: #{tpu_custom_call.1} parent=0 // pred_check_branch
    %105 = sbr.rel (0) target = $region21
  $region20: #{tpu_custom_call.1} parent=0 // pred_region
    _
  $region21: #{tpu_custom_call.1} parent=0 // pred_fallthru
    _

</llo_original>
